<compile_context>
chip_gen: v6e
topology: v6e:2x2x1
jax: 0.10.0
libtpu: 0.0.40
codegen_flags: <defaults>
</compile_context>

<pallas_src>
import functools

import jax
import jax.numpy as jnp
from jax.experimental import pallas as pl
from jax.experimental.pallas import tpu as pltpu


def conv_relu_kernel(x_ref, w_ref, b_ref, o_ref, *, kh_size, kw_size):
    # x_ref: (Hp, Wp, Cin)        full padded image for this batch element (N dim squeezed)
    # w_ref: (KH*KW*Cin, Cout_p)  im2col weights, bf16, zero-padded along Cout
    # b_ref: (1, Cout_p)          bias, f32, zero-padded
    # o_ref: (tile_h, Wo, Cout_p) output row tile (lane-dense last dim)
    tile_h, wo, cout_p = o_ref.shape
    cin = x_ref.shape[-1]

    h = pl.program_id(1)
    row0 = pl.multiple_of(h * tile_h, tile_h)
    # Rows needed for this output row tile, including the (kh_size - 1) halo rows.
    xt = x_ref[pl.ds(row0, tile_h + kh_size - 1), :, :]           # (tile_h+KH-1, Wp, Cin)

    # im2col: build the patch matrix once, then a single MXU matmul with contraction KH*KW*Cin
    # (instead of KH*KW tiny contraction-Cin matmuls, each paying full MXU push/pop latency).
    taps = []
    for dh in range(kh_size):
        for dw in range(kw_size):
            taps.append(xt[dh:dh + tile_h, dw:dw + wo, :])        # (tile_h, Wo, Cin)
    patches = jnp.concatenate(taps, axis=-1)                      # (tile_h, Wo, KH*KW*Cin)
    patches = patches.reshape(tile_h * wo, kh_size * kw_size * cin)

    acc = jnp.dot(patches.astype(jnp.bfloat16), w_ref[...],
                  preferred_element_type=jnp.float32)             # (tile_h*Wo, Cout_p) f32
    acc = jnp.maximum(acc + b_ref[...], 0.0)                      # bias + ReLU
    o_ref[...] = acc.reshape(tile_h, wo, cout_p).astype(o_ref.dtype)


def _pick_tile_h(ho, wo, cout_p, itemsize=4, budget_bytes=2 << 20):
    """Largest divisor of Ho whose f32 output tile fits a modest VMEM budget.

    The 2 MiB default (double-buffered by Pallas) stays far below the scoped VMEM
    limit on all generations (32 MiB scoped / 64 MiB physical on v7x).
    """
    best = 1
    for t in range(1, ho + 1):
        if ho % t == 0 and t * wo * cout_p * itemsize <= budget_bytes:
            best = t
    return best


def basic_conv_forward(x_nchw, weight_oihw, bias, padding=1, tile_h=None):
    """Matches nn.Conv2d(stride=1, padding=padding, bias=True) followed by ReLU (NCHW I/O)."""
    N, Cin, H, W = x_nchw.shape
    Cout, Cin_w, KH, KW = weight_oihw.shape
    assert Cin_w == Cin
    Ho = H + 2 * padding - KH + 1
    Wo = W + 2 * padding - KW + 1
    Hp = H + 2 * padding
    Wp = W + 2 * padding
    cout_p = ((Cout + 127) // 128) * 128                           # lane-dense output channels

    # Layout glue (plain JAX): NCHW -> NHWC, zero pad spatially.
    x = jnp.transpose(x_nchw, (0, 2, 3, 1)).astype(jnp.float32)
    x = jnp.pad(x, ((0, 0), (padding, padding), (padding, padding), (0, 0)))

    # OIHW -> (KH*KW*Cin, Cout_p), zero-padded on Cout, bf16 (MXU-native).
    w = jnp.transpose(weight_oihw, (2, 3, 1, 0)).reshape(KH * KW * Cin, Cout)
    w = jnp.pad(w, ((0, 0), (0, cout_p - Cout))).astype(jnp.bfloat16)
    b = jnp.pad(bias, (0, cout_p - Cout)).reshape(1, cout_p).astype(jnp.float32)

    if tile_h is None:
        tile_h = _pick_tile_h(Ho, Wo, cout_p)
    assert Ho % tile_h == 0, "tile_h must evenly divide the output height"
    n_h_tiles = Ho // tile_h

    kernel = functools.partial(conv_relu_kernel, kh_size=KH, kw_size=KW)

    out_nhwc = pl.pallas_call(
        kernel,
        out_shape=jax.ShapeDtypeStruct((N, Ho, Wo, cout_p), jnp.float32),
        grid_spec=pltpu.PrefetchScalarGridSpec(
            num_scalar_prefetch=0,
            grid=(N, n_h_tiles),
            in_specs=[
                # Full padded image per batch element; block index constant along the
                # row-tile axis so it stays resident across that axis (halo rows handled
                # with an in-kernel pl.ds slice).
                pl.BlockSpec((None, Hp, Wp, Cin), lambda n, h: (n, 0, 0, 0)),
                pl.BlockSpec((KH * KW * Cin, cout_p), lambda n, h: (0, 0)),
                pl.BlockSpec((1, cout_p), lambda n, h: (0, 0)),
            ],
            out_specs=pl.BlockSpec((None, tile_h, Wo, cout_p),
                                   lambda n, h: (n, h, 0, 0)),
        ),
        compiler_params=pltpu.CompilerParams(
            dimension_semantics=("parallel", "parallel")),
    )(x, w, b)

    out_nhwc = out_nhwc[..., :Cout]                                # drop channel padding
    return jnp.transpose(out_nhwc, (0, 3, 1, 2))                   # NHWC -> NCHW


if __name__ == "__main__":
    # Small shapes consistent with BasicConv(in_channels=4, out_channels=8, filter_size=3)
    N, Cin, H, W = 2, 4, 16, 16
    Cout, K = 8, 3

    key = jax.random.PRNGKey(0)
    kx, kw_, kb = jax.random.split(key, 3)

    x = jax.random.normal(kx, (N, Cin, H, W), dtype=jnp.float32)
    # Deterministic kaiming-uniform-like init (PyTorch Conv2d default bound = 1/sqrt(fan_in))
    fan_in = Cin * K * K
    bound = 1.0 / jnp.sqrt(jnp.float32(fan_in))
    weight = jax.random.uniform(kw_, (Cout, Cin, K, K), minval=-bound, maxval=bound,
                                dtype=jnp.float32)
    bias = jax.random.uniform(kb, (Cout,), minval=-bound, maxval=bound, dtype=jnp.float32)

    # tile_h=8 exercises the (N, Ho_tiles) = (2, 2) grid at this toy size.
    out = basic_conv_forward(x, weight, bias, padding=1, tile_h=8)
    out = jax.block_until_ready(out)
    assert out.shape == (N, Cout, H, W)

    # Reference with the same bf16 operand rounding the kernel uses (f32 accumulation).
    xb = x.astype(jnp.bfloat16).astype(jnp.float32)
    wb = weight.astype(jnp.bfloat16).astype(jnp.float32)
    ref = jax.lax.conv_general_dilated(
        xb, wb, window_strides=(1, 1), padding=((1, 1), (1, 1)),
        dimension_numbers=("NCHW", "OIHW", "NCHW"))
    ref = jnp.maximum(ref + bias[None, :, None, None], 0.0)
    err = float(jnp.max(jnp.abs(out - ref)))
    assert err < 5e-3, f"max abs error vs bf16-consistent reference: {err}"

    # Loose sanity check against the full-f32 reference (bf16 operand rounding only).
    ref32 = jax.lax.conv_general_dilated(
        x, weight, window_strides=(1, 1), padding=((1, 1), (1, 1)),
        dimension_numbers=("NCHW", "OIHW", "NCHW"))
    ref32 = jnp.maximum(ref32 + bias[None, :, None, None], 0.0)
    assert float(jnp.max(jnp.abs(out - ref32))) < 1e-1

    print("KERNEL_OK")
</pallas_src>

<mosaic_0001>
module attributes {stable_mosaic.version = 11 : i64} {
  func.func @conv_relu_kernel(%arg0: i32, %arg1: i32, %arg2: memref<1x18x18x4xf32, #tpu.memory_space<vmem>>, %arg3: memref<36x128xbf16, #tpu.memory_space<vmem>>, %arg4: memref<1x128xf32, #tpu.memory_space<vmem>>, %arg5: memref<1x8x16x128xf32, #tpu.memory_space<vmem>>) attributes {dimension_semantics = [#tpu.dimension_semantics<parallel>, #tpu.dimension_semantics<parallel>], iteration_bounds = array<i64: 2, 2>, scalar_prefetch = 0 : i64, scratch_operands = 0 : i64, tpu.core_type = #tpu.core_type<tc>, window_params = [{transform_indices = @transform_0, window_bounds = array<i64: 1, 18, 18, 4>}, {pipeline_mode = #tpu.pipeline_mode<synchronous>, transform_indices = @transform_1, window_bounds = array<i64: 36, 128>}, {pipeline_mode = #tpu.pipeline_mode<synchronous>, transform_indices = @transform_2, window_bounds = array<i64: 1, 128>}, {transform_indices = @transform_3, window_bounds = array<i64: 1, 8, 16, 128>}]} {
    %c8_i32 = arith.constant 8 : i32
    %0 = arith.muli %arg1, %c8_i32 : i32
    %1 = tpu.assume_multiple %0, 8 : i32
    %c0 = arith.constant 0 : index
    %2 = arith.index_cast %1 : i32 to index
    %c0_0 = arith.constant 0 : index
    %c0_1 = arith.constant 0 : index
    %3 = vector.load %arg2[%c0, %2, %c0_0, %c0_1] : memref<1x18x18x4xf32, #tpu.memory_space<vmem>>, vector<1x10x18x4xf32>
    %4 = vector.shape_cast %3 : vector<1x10x18x4xf32> to vector<10x18x4xf32>
    %5 = vector.extract_strided_slice %4 {offsets = [0, 0, 0], sizes = [8, 16, 4], strides = [1, 1, 1]} : vector<10x18x4xf32> to vector<8x16x4xf32>
    %6 = vector.extract_strided_slice %4 {offsets = [0, 1, 0], sizes = [8, 16, 4], strides = [1, 1, 1]} : vector<10x18x4xf32> to vector<8x16x4xf32>
    %7 = vector.extract_strided_slice %4 {offsets = [0, 2, 0], sizes = [8, 16, 4], strides = [1, 1, 1]} : vector<10x18x4xf32> to vector<8x16x4xf32>
    %8 = vector.extract_strided_slice %4 {offsets = [1, 0, 0], sizes = [8, 16, 4], strides = [1, 1, 1]} : vector<10x18x4xf32> to vector<8x16x4xf32>
    %9 = vector.extract_strided_slice %4 {offsets = [1, 1, 0], sizes = [8, 16, 4], strides = [1, 1, 1]} : vector<10x18x4xf32> to vector<8x16x4xf32>
    %10 = vector.extract_strided_slice %4 {offsets = [1, 2, 0], sizes = [8, 16, 4], strides = [1, 1, 1]} : vector<10x18x4xf32> to vector<8x16x4xf32>
    %11 = vector.extract_strided_slice %4 {offsets = [2, 0, 0], sizes = [8, 16, 4], strides = [1, 1, 1]} : vector<10x18x4xf32> to vector<8x16x4xf32>
    %12 = vector.extract_strided_slice %4 {offsets = [2, 1, 0], sizes = [8, 16, 4], strides = [1, 1, 1]} : vector<10x18x4xf32> to vector<8x16x4xf32>
    %13 = vector.extract_strided_slice %4 {offsets = [2, 2, 0], sizes = [8, 16, 4], strides = [1, 1, 1]} : vector<10x18x4xf32> to vector<8x16x4xf32>
    %14 = tpu.concatenate %5, %6, %7, %8, %9, %10, %11, %12, %13 in 2 : vector<8x16x4xf32>, vector<8x16x4xf32>, vector<8x16x4xf32>, vector<8x16x4xf32>, vector<8x16x4xf32>, vector<8x16x4xf32>, vector<8x16x4xf32>, vector<8x16x4xf32>, vector<8x16x4xf32> -> vector<8x16x36xf32>
    %15 = vector.shape_cast %14 : vector<8x16x36xf32> to vector<128x36xf32>
    %16 = arith.truncf %15 : vector<128x36xf32> to vector<128x36xbf16>
    %c0_2 = arith.constant 0 : index
    %c0_3 = arith.constant 0 : index
    %17 = vector.load %arg3[%c0_2, %c0_3] : memref<36x128xbf16, #tpu.memory_space<vmem>>, vector<36x128xbf16>
    %cst = arith.constant dense<0.000000e+00> : vector<128x128xf32>
    %18 = tpu.matmul %16, %17, %cst {dimension_numbers = #tpu.dot_dimension_numbers<[1], [0], [0], [1], [0, 0, 1, 1], [], []>} : vector<128x36xbf16>, vector<36x128xbf16>, vector<128x128xf32> -> vector<128x128xf32>
    %c0_4 = arith.constant 0 : index
    %c0_5 = arith.constant 0 : index
    %19 = vector.load %arg4[%c0_4, %c0_5] : memref<1x128xf32, #tpu.memory_space<vmem>>, vector<1x128xf32>
    %20 = vector.broadcast %19 : vector<1x128xf32> to vector<128x128xf32>
    %21 = arith.addf %18, %20 : vector<128x128xf32>
    %cst_6 = arith.constant 0.000000e+00 : f32
    %22 = vector.broadcast %cst_6 : f32 to vector<128x128xf32>
    %23 = arith.maximumf %21, %22 : vector<128x128xf32>
    %24 = vector.shape_cast %23 : vector<128x128xf32> to vector<8x16x128xf32>
    %c0_7 = arith.constant 0 : index
    %c0_8 = arith.constant 0 : index
    %c0_9 = arith.constant 0 : index
    %c0_10 = arith.constant 0 : index
    %25 = vector.load %arg5[%c0_7, %c0_8, %c0_9, %c0_10] : memref<1x8x16x128xf32, #tpu.memory_space<vmem>>, vector<1x8x16x128xf32>
    %26 = vector.shape_cast %25 : vector<1x8x16x128xf32> to vector<8x16x128xf32>
    %27 = vector.shape_cast %24 : vector<8x16x128xf32> to vector<1x8x16x128xf32>
    tpu.vector_store %arg5[%c0_7, %c0_8, %c0_9, %c0_10], %27 {strides = array<i32>} : memref<1x8x16x128xf32, #tpu.memory_space<vmem>>, vector<1x8x16x128xf32>,
    return
  }
  func.func @transform_0(%arg0: i32, %arg1: i32) -> (i32, i32, i32, i32) {
    %c0_i32 = arith.constant 0 : i32
    %c0_i32_0 = arith.constant 0 : i32
    %c0_i32_1 = arith.constant 0 : i32
    %c0_i32_2 = arith.constant 0 : i32
    return %arg0, %c0_i32, %c0_i32_0, %c0_i32_1 : i32, i32, i32, i32
  }
  func.func @transform_1(%arg0: i32, %arg1: i32) -> (i32, i32) {
    %c0_i32 = arith.constant 0 : i32
    %c0_i32_0 = arith.constant 0 : i32
    %c0_i32_1 = arith.constant 0 : i32
    return %c0_i32, %c0_i32_0 : i32, i32
  }
  func.func @transform_2(%arg0: i32, %arg1: i32) -> (i32, i32) {
    %c0_i32 = arith.constant 0 : i32
    %c0_i32_0 = arith.constant 0 : i32
    %c0_i32_1 = arith.constant 0 : i32
    return %c0_i32, %c0_i32_0 : i32, i32
  }
  func.func @transform_3(%arg0: i32, %arg1: i32) -> (i32, i32, i32, i32) {
    %c0_i32 = arith.constant 0 : i32
    %c0_i32_0 = arith.constant 0 : i32
    %c0_i32_1 = arith.constant 0 : i32
    return %arg0, %arg1, %c0_i32, %c0_i32_0 : i32, i32, i32, i32
  }
}

</mosaic_0001>

<llo_original>
// kernel: tpu_custom_call.1
$region0: #{tpu_custom_call.1}
  #allocation0 [shape = 'u32[]', space=smem, size = 0x4, offset = 0x4, fixed_abs, tag = 'smem constant byte address 0x4 - core index']
  #allocation1 [shape = 'u32[144,128]{1,0:T(1,128)}', space=vmem, size = 0x12000, scoped, tag = 'internal scratch']
  %s0 = inlined_call_operand.vmem [shape: f32[2,18,18,4], index: 0, kind: input, shape index: {}]
  %s1 = inlined_call_operand.vmem [shape: bf16[36,128], index: 1, kind: input, shape index: {}]
  %s2 = inlined_call_operand.vmem [shape: f32[1,128], index: 2, kind: input, shape index: {}]
  %s3 = inlined_call_operand.hbm [shape: f32[2,16,16,128], index: 3, kind: output, shape index: {}]
  %s4 = sld [smem:[#allocation0]]
  $region45: #{tpu_custom_call.1} parent=0
    _
  %s6 = ssub.s32 1, %s4
  %s7 = scalar_select 0, %s6, %s4
  $region1: #{tpu_custom_call.1} parent=0
    #allocation2 [shape = 'u8[131072]{0}', space=vmem, size = 0x20000, scoped, tag = 'output window, operand 0']
    #allocation3 [shape = 's32[2]{0}', space=sflag, size = 0x8, scoped, tag = 'scoped memory for tpu_custom_call.1']
    %8 = vsyncpa [#allocation3], 0
    %s9 = scalar_lea.sflag [#allocation3], 1
    %10 = vsyncpa %s9, 0
    loop: start=0, step=1, limit=6
    $region2: #{tpu_custom_call.1} parent=1 // loop_pre_header
      _
    $region3: #{tpu_custom_call.1} parent=1 // loop_header
      %s12 = sphi 0, %s16
      %p13 = scmp.ge.s32.totalorder %s12, 6
      %s19 = sphi 0, %s31
      %s20 = sphi 0, %s27
      %s21 = sphi 0, %s19
      %s22 = sphi 0, %s20
      %s23 = sphi 0, %s21
      %s24 = sphi 0, %s22
      %s34 = sphi 0, %s36
      %s37 = sphi 0, %s34
      %s38 = sphi 0, %s37
      %s54 = sphi 0, %s38
      %s58 = sphi 0, %s58
      %s60 = sphi 0, %s58
      %s61 = sphi 0, %s60
      %s75 = sphi 0, %s61
      %s79 = sphi 0, %s79
      %s81 = sphi 0, %s79
      %s82 = sphi 0, %s81
      %s96 = sphi 0, %s82
      %s104 = sphi 0, %s106
      %s107 = sphi 0, %s104
      %s108 = sphi 0, %s107
      %s124 = sphi 0, %s108
    $region4: #{tpu_custom_call.1} parent=1 // loop_header_branch
      %15 = sbr.rel (%p13) target = $region8
    $region5: #{tpu_custom_call.1} parent=1 // loop_body
      %s17 = ssub.s32 %s12, 1
      %s18 = ssub.s32 %s12, 2
      %s25 = sadd.s32 1, %s20
      %p26 = scmp.ge.s32.totalorder %s25, 2
      %s27 = scalar_select %p26, 0, %s25
      %s28 = sadd.s32 1, %s19
      %s29 = scalar_select %p26, %s28, %s19
      %p30 = scmp.ge.s32.totalorder %s29, 2
      %s31 = scalar_select %p30, 0, %s29
      %s32 = ssub.s32 %s19, %s31
      %p33 = scmp.eq.s32.totalorder %s32, 0
      %s35 = sadd.s32 %s34, 1
      %s36 = scalar_select %p33, %s34, %s35
      %p39 = pneg %p33
      %p40 = scmp.eq.s32.totalorder %s12, 3
      %p41 = por %p39, %p40
      %p42 = scmp.ne.s32.totalorder %s34, %s37
      %p43 = scmp.eq.s32.totalorder %s12, 0
      %p44 = por %p42, %p43
      %p45 = scmp.ne.s32.totalorder %s34, %s37
      %p46 = scmp.eq.s32.totalorder %s17, 3
      %p47 = por %p45, %p46
      %p48 = scmp.ne.s32.totalorder %s37, %s38
      %p49 = scmp.eq.s32.totalorder %s17, 0
      %p50 = por %p48, %p49
      %p51 = scmp.ne.s32.totalorder %s37, %s38
      %p52 = scmp.eq.s32.totalorder %s18, 3
      %p53 = por %p51, %p52
      %p55 = scmp.ne.s32.totalorder %s38, %s54
      %p56 = scmp.eq.s32.totalorder %s18, 0
      %p57 = por %p55, %p56
      %s59 = sadd.s32 %s58, 1
      %p62 = scmp.eq.s32.totalorder %s12, 3
      %p63 = scmp.ne.s32.totalorder %s58, %s60
      %p64 = scmp.eq.s32.totalorder %s12, 0
      %p65 = por %p63, %p64
      %p66 = scmp.ne.s32.totalorder %s58, %s60
      %p67 = scmp.eq.s32.totalorder %s17, 3
      %p68 = por %p66, %p67
      %p69 = scmp.ne.s32.totalorder %s60, %s61
      %p70 = scmp.eq.s32.totalorder %s17, 0
      %p71 = por %p69, %p70
      %p72 = scmp.ne.s32.totalorder %s60, %s61
      %p73 = scmp.eq.s32.totalorder %s18, 3
      %p74 = por %p72, %p73
      %p76 = scmp.ne.s32.totalorder %s61, %s75
      %p77 = scmp.eq.s32.totalorder %s18, 0
      %p78 = por %p76, %p77
      %s80 = sadd.s32 %s79, 1
      %p83 = scmp.eq.s32.totalorder %s12, 3
      %p84 = scmp.ne.s32.totalorder %s79, %s81
      %p85 = scmp.eq.s32.totalorder %s12, 0
      %p86 = por %p84, %p85
      %p87 = scmp.ne.s32.totalorder %s79, %s81
      %p88 = scmp.eq.s32.totalorder %s17, 3
      %p89 = por %p87, %p88
      %p90 = scmp.ne.s32.totalorder %s81, %s82
      %p91 = scmp.eq.s32.totalorder %s17, 0
      %p92 = por %p90, %p91
      %p93 = scmp.ne.s32.totalorder %s81, %s82
      %p94 = scmp.eq.s32.totalorder %s18, 3
      %p95 = por %p93, %p94
      %p97 = scmp.ne.s32.totalorder %s82, %s96
      %p98 = scmp.eq.s32.totalorder %s18, 0
      %p99 = por %p97, %p98
      %s100 = ssub.s32 %s19, %s31
      %s101 = ssub.s32 %s20, %s27
      %s102 = sor.u32 %s100, %s101
      %p103 = scmp.eq.s32.totalorder %s102, 0
      %s105 = sadd.s32 %s104, 1
      %s106 = scalar_select %p103, %s104, %s105
      %p109 = pneg %p103
      %p110 = scmp.eq.s32.totalorder %s12, 3
      %p111 = por %p109, %p110
      %p112 = scmp.ne.s32.totalorder %s104, %s107
      %p113 = scmp.eq.s32.totalorder %s12, 0
      %p114 = por %p112, %p113
      %p115 = scmp.ne.s32.totalorder %s104, %s107
      %p116 = scmp.eq.s32.totalorder %s17, 3
      %p117 = por %p115, %p116
      %p118 = scmp.ne.s32.totalorder %s107, %s108
      %p119 = scmp.eq.s32.totalorder %s17, 0
      %p120 = por %p118, %p119
      %p121 = scmp.ne.s32.totalorder %s107, %s108
      %p122 = scmp.eq.s32.totalorder %s18, 3
      %p123 = por %p121, %p122
      %p125 = scmp.ne.s32.totalorder %s108, %s124
      %p126 = scmp.eq.s32.totalorder %s18, 0
      %p127 = por %p125, %p126
      %p128 = scmp.le.s32.totalorder 1, %s12
      %p129 = scmp.lt.s32.totalorder %s12, 5
      %p130 = pnand %p128, %p129
      %p131 = pneg %p130
      // Predicated region
      $region9: #{tpu_custom_call.1} parent=5 // pred_check
        _
      $region10: #{tpu_custom_call.1} parent=5 // pred_check_branch
        %133 = sbr.rel (%p130) target = $region12
      $region11: #{tpu_custom_call.1} parent=5 // pred_region
        %s134 = ssub.s32 %s12, 1
        // Predicated region
        $region13: #{tpu_custom_call.1} parent=11 // pred_check
          %p135 = pneg %p71
        $region14: #{tpu_custom_call.1} parent=11 // pred_check_branch
          %137 = sbr.rel (%p135) target = $region16
        $region15: #{tpu_custom_call.1} parent=11 // pred_region
          _
        $region16: #{tpu_custom_call.1} parent=11 // pred_fallthru
          _
        // Predicated region
        $region17: #{tpu_custom_call.1} parent=11 // pred_check
          %p138 = pneg %p92
        $region18: #{tpu_custom_call.1} parent=11 // pred_check_branch
          %140 = sbr.rel (%p138) target = $region20
        $region19: #{tpu_custom_call.1} parent=11 // pred_region
          _
        $region20: #{tpu_custom_call.1} parent=11 // pred_fallthru
          _
      $region12: #{tpu_custom_call.1} parent=5 // pred_fallthru
        _
      %p141 = scmp.lt.s32.totalorder %s12, 4
      // Predicated region
      $region21: #{tpu_custom_call.1} parent=5 // pred_check
        %p142 = pneg %p141
      $region22: #{tpu_custom_call.1} parent=5 // pred_check_branch
        %144 = sbr.rel (%p142) target = $region24
      $region23: #{tpu_custom_call.1} parent=5 // pred_region
        // Predicated region
        $region25: #{tpu_custom_call.1} parent=23 // pred_check
          %p145 = pneg %p44
        $region26: #{tpu_custom_call.1} parent=23 // pred_check_branch
          %147 = sbr.rel (%p145) target = $region28
        $region27: #{tpu_custom_call.1} parent=23 // pred_region
          %p148 = scmp.lt.s32.totalorder %s19, 1
          %s149 = scalar_select %p148, %s19, 1
          %s150 = smul.addr %s149, 54
          %s151 = smul.addr %s150, 8
          %s152 = scalar_lea.vmem %s0, %s151
        $region28: #{tpu_custom_call.1} parent=23 // pred_fallthru
          _
      $region24: #{tpu_custom_call.1} parent=5 // pred_fallthru
        _
      %p153 = scmp.le.s32.totalorder 1, %s12
      %p154 = scmp.lt.s32.totalorder %s12, 5
      %p155 = pnand %p153, %p154
      %p156 = pneg %p155
      // Predicated region
      $region29: #{tpu_custom_call.1} parent=5 // pred_check
        _
      $region30: #{tpu_custom_call.1} parent=5 // pred_check_branch
        %158 = sbr.rel (%p155) target = $region32
      $region31: #{tpu_custom_call.1} parent=5 // pred_region
        %s159 = ssub.s32 %s12, 1
        %p160 = scmp.lt.s32.totalorder %s21, 1
        %s161 = scalar_select %p160, %s21, 1
        %s162 = smul.addr %s161, 54
        %s163 = smul.addr %s162, 8
        %s164 = scalar_lea.vmem %s0, %s163
        %p165 = pneg %p50
        %p166 = pneg %p47
        %p167 = pneg %p71
        %p168 = pneg %p68
        %p169 = pneg %p92
        %p170 = pneg %p89
        %p171 = pneg %p120
        %p172 = pneg %p117
        %s173 = sand.u32 %s107, 1
        %s174 = scalar_lea.sflag [#allocation3], %s173
        %s175 = sand.u32 %s107, 1
        %s176 = smul.addr %s175, 128
        %s177 = scalar_lea.vmem [#allocation2], %s176
        %p178 = scmp.lt.s32.totalorder %s21, 1
        %s179 = scalar_select %p178, %s21, 1
        %s180 = smul.addr %s179, 54
        %s181 = smul.addr %s180, 8
        %s182 = scalar_lea.vmem %s0, %s181
        %s183 = smul.u32 8, %s22
        %s185 = smul.u32 %s22, 8
        %s186 = smul.u32 %s185, 24
        %s187 = scalar_lea.vmem %s182, %s186
        %v188 = vld [vmem:[%s187] sm:$0xff]
        %v189 = vld [vmem:[%s187 + $0x8] sm:$0xff]
        %v190 = vld [vmem:[%s187 + $0x10] sm:$0x3]
        %v191 = vld [vmem:[%s187 + $0x18] sm:$0xff]
        %v192 = vld [vmem:[%s187 + $0x20] sm:$0xff]
        %v193 = vld [vmem:[%s187 + $0x28] sm:$0x3]
        %v194 = vld [vmem:[%s187 + $0x30] sm:$0xff]
        %v195 = vld [vmem:[%s187 + $0x38] sm:$0xff]
        %v196 = vld [vmem:[%s187 + $0x40] sm:$0x3]
        %v197 = vld [vmem:[%s187 + $0x48] sm:$0xff]
        %v198 = vld [vmem:[%s187 + $0x50] sm:$0xff]
        %v199 = vld [vmem:[%s187 + $0x58] sm:$0x3]
        %v200 = vld [vmem:[%s187 + $0x60] sm:$0xff]
        %v201 = vld [vmem:[%s187 + $0x68] sm:$0xff]
        %v202 = vld [vmem:[%s187 + $0x70] sm:$0x3]
        %v203 = vld [vmem:[%s187 + $0x78] sm:$0xff]
        %v204 = vld [vmem:[%s187 + $0x80] sm:$0xff]
        %v205 = vld [vmem:[%s187 + $0x88] sm:$0x3]
        %v206 = vld [vmem:[%s187 + $0x90] sm:$0xff]
        %v207 = vld [vmem:[%s187 + $0x98] sm:$0xff]
        %v208 = vld [vmem:[%s187 + $0xa0] sm:$0x3]
        %v209 = vld [vmem:[%s187 + $0xa8] sm:$0xff]
        %v210 = vld [vmem:[%s187 + $0xb0] sm:$0xff]
        %v211 = vld [vmem:[%s187 + $0xb8] sm:$0x3]
        %v212 = vld [vmem:[%s187 + $0xc0] sm:$0xff]
        %v213 = vld [vmem:[%s187 + $0xc8] sm:$0xff]
        %v214 = vld [vmem:[%s187 + $0xd0] sm:$0x3]
        %v215 = vld [vmem:[%s187 + $0xd8] sm:$0xff]
        %v216 = vld [vmem:[%s187 + $0xe0] sm:$0xff]
        %v217 = vld [vmem:[%s187 + $0xe8] sm:$0x3]
        %vm242 = vcmask 1046528
        %v243 = vrot.slane %v188, 1
        %v244 = vrot.slane %v189, 1
        %v245 = vsel %vm242, %v243, %v244
        %v246 = vrot.slane %v190, 1
        %v247 = vsel %vm242, %v244, %v246
        %v248 = vrot.slane %v191, 1
        %v249 = vrot.slane %v192, 1
        %v250 = vsel %vm242, %v248, %v249
        %v251 = vrot.slane %v193, 1
        %v252 = vsel %vm242, %v249, %v251
        %v253 = vrot.slane %v194, 1
        %v254 = vrot.slane %v195, 1
        %v255 = vsel %vm242, %v253, %v254
        %v256 = vrot.slane %v196, 1
        %v257 = vsel %vm242, %v254, %v256
        %v258 = vrot.slane %v197, 1
        %v259 = vrot.slane %v198, 1
        %v260 = vsel %vm242, %v258, %v259
        %v261 = vrot.slane %v199, 1
        %v262 = vsel %vm242, %v259, %v261
        %v263 = vrot.slane %v200, 1
        %v264 = vrot.slane %v201, 1
        %v265 = vsel %vm242, %v263, %v264
        %v266 = vrot.slane %v202, 1
        %v267 = vsel %vm242, %v264, %v266
        %v268 = vrot.slane %v203, 1
        %v269 = vrot.slane %v204, 1
        %v270 = vsel %vm242, %v268, %v269
        %v271 = vrot.slane %v205, 1
        %v272 = vsel %vm242, %v269, %v271
        %v273 = vrot.slane %v206, 1
        %v274 = vrot.slane %v207, 1
        %v275 = vsel %vm242, %v273, %v274
        %v276 = vrot.slane %v208, 1
        %v277 = vsel %vm242, %v274, %v276
        %v278 = vrot.slane %v209, 1
        %v279 = vrot.slane %v210, 1
        %v280 = vsel %vm242, %v278, %v279
        %v281 = vrot.slane %v211, 1
        %v282 = vsel %vm242, %v279, %v281
        %283 = vrot.lane.b32.xlu0 %v245, 4
        %v284 = vpop.permute.xlu0 %283
        %285 = vrot.lane.b32.xlu0 %v247, 4
        %v286 = vpop.permute.xlu0 %285
        %287 = vrot.lane.b32.xlu0 %v250, 4
        %v288 = vpop.permute.xlu0 %287
        %289 = vrot.lane.b32.xlu0 %v252, 4
        %v290 = vpop.permute.xlu0 %289
        %291 = vrot.lane.b32.xlu0 %v255, 4
        %v292 = vpop.permute.xlu0 %291
        %293 = vrot.lane.b32.xlu0 %v257, 4
        %v294 = vpop.permute.xlu0 %293
        %295 = vrot.lane.b32.xlu0 %v260, 4
        %v296 = vpop.permute.xlu0 %295
        %297 = vrot.lane.b32.xlu0 %v262, 4
        %v298 = vpop.permute.xlu0 %297
        %299 = vrot.lane.b32.xlu0 %v265, 4
        %v300 = vpop.permute.xlu0 %299
        %301 = vrot.lane.b32.xlu0 %v267, 4
        %v302 = vpop.permute.xlu0 %301
        %303 = vrot.lane.b32.xlu0 %v270, 4
        %v304 = vpop.permute.xlu0 %303
        %305 = vrot.lane.b32.xlu0 %v272, 4
        %v306 = vpop.permute.xlu0 %305
        %307 = vrot.lane.b32.xlu0 %v275, 4
        %v308 = vpop.permute.xlu0 %307
        %309 = vrot.lane.b32.xlu0 %v277, 4
        %v310 = vpop.permute.xlu0 %309
        %311 = vrot.lane.b32.xlu0 %v280, 4
        %v312 = vpop.permute.xlu0 %311
        %313 = vrot.lane.b32.xlu0 %v282, 4
        %v314 = vpop.permute.xlu0 %313
        %vm331 = vcmask 1045504
        %v332 = vrot.slane %v188, 2
        %v333 = vrot.slane %v189, 2
        %v334 = vsel %vm331, %v332, %v333
        %v335 = vrot.slane %v190, 2
        %v336 = vsel %vm331, %v333, %v335
        %v337 = vrot.slane %v191, 2
        %v338 = vrot.slane %v192, 2
        %v339 = vsel %vm331, %v337, %v338
        %v340 = vrot.slane %v193, 2
        %v341 = vsel %vm331, %v338, %v340
        %v342 = vrot.slane %v194, 2
        %v343 = vrot.slane %v195, 2
        %v344 = vsel %vm331, %v342, %v343
        %v345 = vrot.slane %v196, 2
        %v346 = vsel %vm331, %v343, %v345
        %v347 = vrot.slane %v197, 2
        %v348 = vrot.slane %v198, 2
        %v349 = vsel %vm331, %v347, %v348
        %v350 = vrot.slane %v199, 2
        %v351 = vsel %vm331, %v348, %v350
        %v352 = vrot.slane %v200, 2
        %v353 = vrot.slane %v201, 2
        %v354 = vsel %vm331, %v352, %v353
        %v355 = vrot.slane %v202, 2
        %v356 = vsel %vm331, %v353, %v355
        %v357 = vrot.slane %v203, 2
        %v358 = vrot.slane %v204, 2
        %v359 = vsel %vm331, %v357, %v358
        %v360 = vrot.slane %v205, 2
        %v361 = vsel %vm331, %v358, %v360
        %v362 = vrot.slane %v206, 2
        %v363 = vrot.slane %v207, 2
        %v364 = vsel %vm331, %v362, %v363
        %v365 = vrot.slane %v208, 2
        %v366 = vsel %vm331, %v363, %v365
        %v367 = vrot.slane %v209, 2
        %v368 = vrot.slane %v210, 2
        %v369 = vsel %vm331, %v367, %v368
        %v370 = vrot.slane %v211, 2
        %v371 = vsel %vm331, %v368, %v370
        %372 = vrot.lane.b32.xlu0 %v334, 8
        %v373 = vpop.permute.xlu0 %372
        %374 = vrot.lane.b32.xlu0 %v336, 8
        %v375 = vpop.permute.xlu0 %374
        %376 = vrot.lane.b32.xlu0 %v339, 8
        %v377 = vpop.permute.xlu0 %376
        %378 = vrot.lane.b32.xlu0 %v341, 8
        %v379 = vpop.permute.xlu0 %378
        %380 = vrot.lane.b32.xlu0 %v344, 8
        %v381 = vpop.permute.xlu0 %380
        %382 = vrot.lane.b32.xlu0 %v346, 8
        %v383 = vpop.permute.xlu0 %382
        %384 = vrot.lane.b32.xlu0 %v349, 8
        %v385 = vpop.permute.xlu0 %384
        %386 = vrot.lane.b32.xlu0 %v351, 8
        %v387 = vpop.permute.xlu0 %386
        %388 = vrot.lane.b32.xlu0 %v354, 8
        %v389 = vpop.permute.xlu0 %388
        %390 = vrot.lane.b32.xlu0 %v356, 8
        %v391 = vpop.permute.xlu0 %390
        %392 = vrot.lane.b32.xlu0 %v359, 8
        %v393 = vpop.permute.xlu0 %392
        %394 = vrot.lane.b32.xlu0 %v361, 8
        %v395 = vpop.permute.xlu0 %394
        %396 = vrot.lane.b32.xlu0 %v364, 8
        %v397 = vpop.permute.xlu0 %396
        %398 = vrot.lane.b32.xlu0 %v366, 8
        %v399 = vpop.permute.xlu0 %398
        %400 = vrot.lane.b32.xlu0 %v369, 8
        %v401 = vpop.permute.xlu0 %400
        %402 = vrot.lane.b32.xlu0 %v371, 8
        %v403 = vpop.permute.xlu0 %402
        %422 = vrot.lane.b32.xlu0 %v191, 12
        %v423 = vpop.permute.xlu0 %422
        %424 = vrot.lane.b32.xlu0 %v192, 12
        %v425 = vpop.permute.xlu0 %424
        %426 = vrot.lane.b32.xlu0 %v194, 12
        %v427 = vpop.permute.xlu0 %426
        %428 = vrot.lane.b32.xlu0 %v195, 12
        %v429 = vpop.permute.xlu0 %428
        %430 = vrot.lane.b32.xlu0 %v197, 12
        %v431 = vpop.permute.xlu0 %430
        %432 = vrot.lane.b32.xlu0 %v198, 12
        %v433 = vpop.permute.xlu0 %432
        %434 = vrot.lane.b32.xlu0 %v200, 12
        %v435 = vpop.permute.xlu0 %434
        %436 = vrot.lane.b32.xlu0 %v201, 12
        %v437 = vpop.permute.xlu0 %436
        %438 = vrot.lane.b32.xlu0 %v203, 12
        %v439 = vpop.permute.xlu0 %438
        %440 = vrot.lane.b32.xlu0 %v204, 12
        %v441 = vpop.permute.xlu0 %440
        %442 = vrot.lane.b32.xlu0 %v206, 12
        %v443 = vpop.permute.xlu0 %442
        %444 = vrot.lane.b32.xlu0 %v207, 12
        %v445 = vpop.permute.xlu0 %444
        %446 = vrot.lane.b32.xlu0 %v209, 12
        %v447 = vpop.permute.xlu0 %446
        %448 = vrot.lane.b32.xlu0 %v210, 12
        %v449 = vpop.permute.xlu0 %448
        %450 = vrot.lane.b32.xlu0 %v212, 12
        %v451 = vpop.permute.xlu0 %450
        %452 = vrot.lane.b32.xlu0 %v213, 12
        %v453 = vpop.permute.xlu0 %452
        %v471 = vrot.slane %v212, 1
        %v472 = vrot.slane %v213, 1
        %v473 = vsel %vm242, %v471, %v472
        %v474 = vrot.slane %v214, 1
        %v475 = vsel %vm242, %v472, %v474
        %476 = vrot.lane.b32.xlu0 %v250, 16
        %v477 = vpop.permute.xlu0 %476
        %478 = vrot.lane.b32.xlu0 %v252, 16
        %v479 = vpop.permute.xlu0 %478
        %480 = vrot.lane.b32.xlu0 %v255, 16
        %v481 = vpop.permute.xlu0 %480
        %482 = vrot.lane.b32.xlu0 %v257, 16
        %v483 = vpop.permute.xlu0 %482
        %484 = vrot.lane.b32.xlu0 %v260, 16
        %v485 = vpop.permute.xlu0 %484
        %486 = vrot.lane.b32.xlu0 %v262, 16
        %v487 = vpop.permute.xlu0 %486
        %488 = vrot.lane.b32.xlu0 %v265, 16
        %v489 = vpop.permute.xlu0 %488
        %490 = vrot.lane.b32.xlu0 %v267, 16
        %v491 = vpop.permute.xlu0 %490
        %492 = vrot.lane.b32.xlu0 %v270, 16
        %v493 = vpop.permute.xlu0 %492
        %494 = vrot.lane.b32.xlu0 %v272, 16
        %v495 = vpop.permute.xlu0 %494
        %496 = vrot.lane.b32.xlu0 %v275, 16
        %v497 = vpop.permute.xlu0 %496
        %498 = vrot.lane.b32.xlu0 %v277, 16
        %v499 = vpop.permute.xlu0 %498
        %500 = vrot.lane.b32.xlu0 %v280, 16
        %v501 = vpop.permute.xlu0 %500
        %502 = vrot.lane.b32.xlu0 %v282, 16
        %v503 = vpop.permute.xlu0 %502
        %504 = vrot.lane.b32.xlu0 %v473, 16
        %v505 = vpop.permute.xlu0 %504
        %506 = vrot.lane.b32.xlu0 %v475, 16
        %v507 = vpop.permute.xlu0 %506
        %v524 = vrot.slane %v212, 2
        %v525 = vrot.slane %v213, 2
        %v526 = vsel %vm331, %v524, %v525
        %v527 = vrot.slane %v214, 2
        %v528 = vsel %vm331, %v525, %v527
        %529 = vrot.lane.b32.xlu0 %v339, 20
        %v530 = vpop.permute.xlu0 %529
        %531 = vrot.lane.b32.xlu0 %v341, 20
        %v532 = vpop.permute.xlu0 %531
        %533 = vrot.lane.b32.xlu0 %v344, 20
        %v534 = vpop.permute.xlu0 %533
        %535 = vrot.lane.b32.xlu0 %v346, 20
        %v536 = vpop.permute.xlu0 %535
        %537 = vrot.lane.b32.xlu0 %v349, 20
        %v538 = vpop.permute.xlu0 %537
        %539 = vrot.lane.b32.xlu0 %v351, 20
        %v540 = vpop.permute.xlu0 %539
        %541 = vrot.lane.b32.xlu0 %v354, 20
        %v542 = vpop.permute.xlu0 %541
        %543 = vrot.lane.b32.xlu0 %v356, 20
        %v544 = vpop.permute.xlu0 %543
        %545 = vrot.lane.b32.xlu0 %v359, 20
        %v546 = vpop.permute.xlu0 %545
        %547 = vrot.lane.b32.xlu0 %v361, 20
        %v548 = vpop.permute.xlu0 %547
        %549 = vrot.lane.b32.xlu0 %v364, 20
        %v550 = vpop.permute.xlu0 %549
        %551 = vrot.lane.b32.xlu0 %v366, 20
        %v552 = vpop.permute.xlu0 %551
        %553 = vrot.lane.b32.xlu0 %v369, 20
        %v554 = vpop.permute.xlu0 %553
        %555 = vrot.lane.b32.xlu0 %v371, 20
        %v556 = vpop.permute.xlu0 %555
        %557 = vrot.lane.b32.xlu0 %v526, 20
        %v558 = vpop.permute.xlu0 %557
        %559 = vrot.lane.b32.xlu0 %v528, 20
        %v560 = vpop.permute.xlu0 %559
        %579 = vrot.lane.b32.xlu0 %v194, 24
        %v580 = vpop.permute.xlu0 %579
        %581 = vrot.lane.b32.xlu0 %v195, 24
        %v582 = vpop.permute.xlu0 %581
        %583 = vrot.lane.b32.xlu0 %v197, 24
        %v584 = vpop.permute.xlu0 %583
        %585 = vrot.lane.b32.xlu0 %v198, 24
        %v586 = vpop.permute.xlu0 %585
        %587 = vrot.lane.b32.xlu0 %v200, 24
        %v588 = vpop.permute.xlu0 %587
        %589 = vrot.lane.b32.xlu0 %v201, 24
        %v590 = vpop.permute.xlu0 %589
        %591 = vrot.lane.b32.xlu0 %v203, 24
        %v592 = vpop.permute.xlu0 %591
        %593 = vrot.lane.b32.xlu0 %v204, 24
        %v594 = vpop.permute.xlu0 %593
        %595 = vrot.lane.b32.xlu0 %v206, 24
        %v596 = vpop.permute.xlu0 %595
        %597 = vrot.lane.b32.xlu0 %v207, 24
        %v598 = vpop.permute.xlu0 %597
        %599 = vrot.lane.b32.xlu0 %v209, 24
        %v600 = vpop.permute.xlu0 %599
        %601 = vrot.lane.b32.xlu0 %v210, 24
        %v602 = vpop.permute.xlu0 %601
        %603 = vrot.lane.b32.xlu0 %v212, 24
        %v604 = vpop.permute.xlu0 %603
        %605 = vrot.lane.b32.xlu0 %v213, 24
        %v606 = vpop.permute.xlu0 %605
        %607 = vrot.lane.b32.xlu0 %v215, 24
        %v608 = vpop.permute.xlu0 %607
        %609 = vrot.lane.b32.xlu0 %v216, 24
        %v610 = vpop.permute.xlu0 %609
        %v628 = vrot.slane %v215, 1
        %v629 = vrot.slane %v216, 1
        %v630 = vsel %vm242, %v628, %v629
        %v631 = vrot.slane %v217, 1
        %v632 = vsel %vm242, %v629, %v631
        %633 = vrot.lane.b32.xlu0 %v255, 28
        %v634 = vpop.permute.xlu0 %633
        %635 = vrot.lane.b32.xlu0 %v257, 28
        %v636 = vpop.permute.xlu0 %635
        %637 = vrot.lane.b32.xlu0 %v260, 28
        %v638 = vpop.permute.xlu0 %637
        %639 = vrot.lane.b32.xlu0 %v262, 28
        %v640 = vpop.permute.xlu0 %639
        %641 = vrot.lane.b32.xlu0 %v265, 28
        %v642 = vpop.permute.xlu0 %641
        %643 = vrot.lane.b32.xlu0 %v267, 28
        %v644 = vpop.permute.xlu0 %643
        %645 = vrot.lane.b32.xlu0 %v270, 28
        %v646 = vpop.permute.xlu0 %645
        %647 = vrot.lane.b32.xlu0 %v272, 28
        %v648 = vpop.permute.xlu0 %647
        %649 = vrot.lane.b32.xlu0 %v275, 28
        %v650 = vpop.permute.xlu0 %649
        %651 = vrot.lane.b32.xlu0 %v277, 28
        %v652 = vpop.permute.xlu0 %651
        %653 = vrot.lane.b32.xlu0 %v280, 28
        %v654 = vpop.permute.xlu0 %653
        %655 = vrot.lane.b32.xlu0 %v282, 28
        %v656 = vpop.permute.xlu0 %655
        %657 = vrot.lane.b32.xlu0 %v473, 28
        %v658 = vpop.permute.xlu0 %657
        %659 = vrot.lane.b32.xlu0 %v475, 28
        %v660 = vpop.permute.xlu0 %659
        %661 = vrot.lane.b32.xlu0 %v630, 28
        %v662 = vpop.permute.xlu0 %661
        %663 = vrot.lane.b32.xlu0 %v632, 28
        %v664 = vpop.permute.xlu0 %663
        %v681 = vrot.slane %v215, 2
        %v682 = vrot.slane %v216, 2
        %v683 = vsel %vm331, %v681, %v682
        %v684 = vrot.slane %v217, 2
        %v685 = vsel %vm331, %v682, %v684
        %686 = vrot.lane.b32.xlu0 %v344, 32
        %v687 = vpop.permute.xlu0 %686
        %688 = vrot.lane.b32.xlu0 %v346, 32
        %v689 = vpop.permute.xlu0 %688
        %690 = vrot.lane.b32.xlu0 %v349, 32
        %v691 = vpop.permute.xlu0 %690
        %692 = vrot.lane.b32.xlu0 %v351, 32
        %v693 = vpop.permute.xlu0 %692
        %694 = vrot.lane.b32.xlu0 %v354, 32
        %v695 = vpop.permute.xlu0 %694
        %696 = vrot.lane.b32.xlu0 %v356, 32
        %v697 = vpop.permute.xlu0 %696
        %698 = vrot.lane.b32.xlu0 %v359, 32
        %v699 = vpop.permute.xlu0 %698
        %700 = vrot.lane.b32.xlu0 %v361, 32
        %v701 = vpop.permute.xlu0 %700
        %702 = vrot.lane.b32.xlu0 %v364, 32
        %v703 = vpop.permute.xlu0 %702
        %704 = vrot.lane.b32.xlu0 %v366, 32
        %v705 = vpop.permute.xlu0 %704
        %706 = vrot.lane.b32.xlu0 %v369, 32
        %v707 = vpop.permute.xlu0 %706
        %708 = vrot.lane.b32.xlu0 %v371, 32
        %v709 = vpop.permute.xlu0 %708
        %710 = vrot.lane.b32.xlu0 %v526, 32
        %v711 = vpop.permute.xlu0 %710
        %712 = vrot.lane.b32.xlu0 %v528, 32
        %v713 = vpop.permute.xlu0 %712
        %714 = vrot.lane.b32.xlu0 %v683, 32
        %v715 = vpop.permute.xlu0 %714
        %716 = vrot.lane.b32.xlu0 %v685, 32
        %v717 = vpop.permute.xlu0 %716
        %vm734 = vcmask 31744
        %v735 = vsel %vm734, %v188, %v284
        %v736 = vsel %vm734, %v189, %v286
        %v737 = vsel %vm734, %v191, %v288
        %v738 = vsel %vm734, %v192, %v290
        %v739 = vsel %vm734, %v194, %v292
        %v740 = vsel %vm734, %v195, %v294
        %v741 = vsel %vm734, %v197, %v296
        %v742 = vsel %vm734, %v198, %v298
        %v743 = vsel %vm734, %v200, %v300
        %v744 = vsel %vm734, %v201, %v302
        %v745 = vsel %vm734, %v203, %v304
        %v746 = vsel %vm734, %v204, %v306
        %v747 = vsel %vm734, %v206, %v308
        %v748 = vsel %vm734, %v207, %v310
        %v749 = vsel %vm734, %v209, %v312
        %v750 = vsel %vm734, %v210, %v314
        %vm751 = vcmask 64512
        %v752 = vsel %vm751, %v735, %v373
        %v753 = vsel %vm751, %v736, %v375
        %v754 = vsel %vm751, %v737, %v377
        %v755 = vsel %vm751, %v738, %v379
        %v756 = vsel %vm751, %v739, %v381
        %v757 = vsel %vm751, %v740, %v383
        %v758 = vsel %vm751, %v741, %v385
        %v759 = vsel %vm751, %v742, %v387
        %v760 = vsel %vm751, %v743, %v389
        %v761 = vsel %vm751, %v744, %v391
        %v762 = vsel %vm751, %v745, %v393
        %v763 = vsel %vm751, %v746, %v395
        %v764 = vsel %vm751, %v747, %v397
        %v765 = vsel %vm751, %v748, %v399
        %v766 = vsel %vm751, %v749, %v401
        %v767 = vsel %vm751, %v750, %v403
        %vm768 = vcmask 97280
        %v769 = vsel %vm768, %v752, %v423
        %v770 = vsel %vm768, %v753, %v425
        %v771 = vsel %vm768, %v754, %v427
        %v772 = vsel %vm768, %v755, %v429
        %v773 = vsel %vm768, %v756, %v431
        %v774 = vsel %vm768, %v757, %v433
        %v775 = vsel %vm768, %v758, %v435
        %v776 = vsel %vm768, %v759, %v437
        %v777 = vsel %vm768, %v760, %v439
        %v778 = vsel %vm768, %v761, %v441
        %v779 = vsel %vm768, %v762, %v443
        %v780 = vsel %vm768, %v763, %v445
        %v781 = vsel %vm768, %v764, %v447
        %v782 = vsel %vm768, %v765, %v449
        %v783 = vsel %vm768, %v766, %v451
        %v784 = vsel %vm768, %v767, %v453
        %vm785 = vcmask 130048
        %v786 = vsel %vm785, %v769, %v477
        %v787 = vsel %vm785, %v770, %v479
        %v788 = vsel %vm785, %v771, %v481
        %v789 = vsel %vm785, %v772, %v483
        %v790 = vsel %vm785, %v773, %v485
        %v791 = vsel %vm785, %v774, %v487
        %v792 = vsel %vm785, %v775, %v489
        %v793 = vsel %vm785, %v776, %v491
        %v794 = vsel %vm785, %v777, %v493
        %v795 = vsel %vm785, %v778, %v495
        %v796 = vsel %vm785, %v779, %v497
        %v797 = vsel %vm785, %v780, %v499
        %v798 = vsel %vm785, %v781, %v501
        %v799 = vsel %vm785, %v782, %v503
        %v800 = vsel %vm785, %v783, %v505
        %v801 = vsel %vm785, %v784, %v507
        %vm802 = vcmask 162816
        %v803 = vsel %vm802, %v786, %v530
        %v804 = vsel %vm802, %v787, %v532
        %v805 = vsel %vm802, %v788, %v534
        %v806 = vsel %vm802, %v789, %v536
        %v807 = vsel %vm802, %v790, %v538
        %v808 = vsel %vm802, %v791, %v540
        %v809 = vsel %vm802, %v792, %v542
        %v810 = vsel %vm802, %v793, %v544
        %v811 = vsel %vm802, %v794, %v546
        %v812 = vsel %vm802, %v795, %v548
        %v813 = vsel %vm802, %v796, %v550
        %v814 = vsel %vm802, %v797, %v552
        %v815 = vsel %vm802, %v798, %v554
        %v816 = vsel %vm802, %v799, %v556
        %v817 = vsel %vm802, %v800, %v558
        %v818 = vsel %vm802, %v801, %v560
        %vm819 = vcmask 195584
        %v820 = vsel %vm819, %v803, %v580
        %v821 = vsel %vm819, %v804, %v582
        %v822 = vsel %vm819, %v805, %v584
        %v823 = vsel %vm819, %v806, %v586
        %v824 = vsel %vm819, %v807, %v588
        %v825 = vsel %vm819, %v808, %v590
        %v826 = vsel %vm819, %v809, %v592
        %v827 = vsel %vm819, %v810, %v594
        %v828 = vsel %vm819, %v811, %v596
        %v829 = vsel %vm819, %v812, %v598
        %v830 = vsel %vm819, %v813, %v600
        %v831 = vsel %vm819, %v814, %v602
        %v832 = vsel %vm819, %v815, %v604
        %v833 = vsel %vm819, %v816, %v606
        %v834 = vsel %vm819, %v817, %v608
        %v835 = vsel %vm819, %v818, %v610
        %vm836 = vcmask 228352
        %v837 = vsel %vm836, %v820, %v634
        %v838 = vsel %vm836, %v821, %v636
        %v839 = vsel %vm836, %v822, %v638
        %v840 = vsel %vm836, %v823, %v640
        %v841 = vsel %vm836, %v824, %v642
        %v842 = vsel %vm836, %v825, %v644
        %v843 = vsel %vm836, %v826, %v646
        %v844 = vsel %vm836, %v827, %v648
        %v845 = vsel %vm836, %v828, %v650
        %v846 = vsel %vm836, %v829, %v652
        %v847 = vsel %vm836, %v830, %v654
        %v848 = vsel %vm836, %v831, %v656
        %v849 = vsel %vm836, %v832, %v658
        %v850 = vsel %vm836, %v833, %v660
        %v851 = vsel %vm836, %v834, %v662
        %v852 = vsel %vm836, %v835, %v664
        %vm853 = vcmask 261120
        %v854 = vsel %vm853, %v837, %v687
        %v855 = vsel %vm853, %v838, %v689
        %v856 = vsel %vm853, %v839, %v691
        %v857 = vsel %vm853, %v840, %v693
        %v858 = vsel %vm853, %v841, %v695
        %v859 = vsel %vm853, %v842, %v697
        %v860 = vsel %vm853, %v843, %v699
        %v861 = vsel %vm853, %v844, %v701
        %v862 = vsel %vm853, %v845, %v703
        %v863 = vsel %vm853, %v846, %v705
        %v864 = vsel %vm853, %v847, %v707
        %v865 = vsel %vm853, %v848, %v709
        %v866 = vsel %vm853, %v849, %v711
        %v867 = vsel %vm853, %v850, %v713
        %v868 = vsel %vm853, %v851, %v715
        %v869 = vsel %vm853, %v852, %v717
        %v870 = vpack.c.bf16 %v855, %v854
        %v871 = vpack.c.bf16 %v857, %v856
        %v872 = vpack.c.bf16 %v859, %v858
        %v873 = vpack.c.bf16 %v861, %v860
        %v874 = vpack.c.bf16 %v863, %v862
        %v875 = vpack.c.bf16 %v865, %v864
        %v876 = vpack.c.bf16 %v867, %v866
        %v877 = vpack.c.bf16 %v869, %v868
        %v878 = vld [vmem:[%s1] sm:$0xf]
        %v879 = vld [vmem:[%s1 + $0x4] sm:$0xf]
        %v880 = vld [vmem:[%s1 + $0x8] sm:$0xf]
        %v881 = vld [vmem:[%s1 + $0xc] sm:$0xf]
        %v882 = vld [vmem:[%s1 + $0x10] sm:$0x3]
        %v883 = vld [vmem:[%s2] sm:$0x1]
        %v885 = vlaneseq
        %v886 = vshrl.u32 %v885, 7
        %v887 = vsub.s32 0, %v886
        %v888 = vrot.slane %v883, %v887
        %v895 = vunpack.c.l.b16 %v878
        %v896 = vunpack.c.l.b16 %v879
        %v897 = vunpack.c.l.b16 %v880
        %v898 = vunpack.c.l.b16 %v881
        %v899 = vunpack.c.l.b16 %v882
        %v900 = vpack.c.b16 %v896, %v895
        %v901 = vpack.c.b16 %v898, %v897
        %v902 = vpack.c.b16 %v899, %v899
        %vm905 = vcmask 293888
        %v907 = vsel %vm905, %v870, 0
        %v910 = vsel %vm905, %v871, 0
        %v913 = vsel %vm905, %v872, 0
        %v916 = vsel %vm905, %v873, 0
        %v919 = vsel %vm905, %v874, 0
        %v922 = vsel %vm905, %v875, 0
        %v925 = vsel %vm905, %v876, 0
        %v928 = vsel %vm905, %v877, 0
        %vm930 = vcmask 1041408
        %v932 = vsel %vm930, %v902, 0
        %934 = vmatprep.subr.bf16.mxu0 0
        %935 = vmatpush1.bf16.msra.mxu0 0
        %936 = vmatprep.subr.bf16.mxu0 0
        %937 = vmatpush1.bf16.msra.mxu0 0
        %938 = vmatprep.subr.bf16.mxu0 0
        %939 = vmatpush1.bf16.msra.mxu0 0
        %940 = vmatprep.subr.bf16.mxu0 0
        %941 = vmatpush1.bf16.msra.mxu0 0
        %942 = vmatprep.subr.bf16.mxu0 0
        %943 = vmatpush1.bf16.msra.mxu0 0
        %944 = vmatprep.subr.bf16.mxu0 0
        %945 = vmatpush1.bf16.msra.mxu0 %v932
        %946 = vmatprep.subr.bf16.mxu0 0
        %947 = vmatpush1.bf16.msra.mxu0 %v901
        %948 = vmatprep.subr.bf16.mxu0 0
        %949 = vmatpush1.bf16.msra.mxu0 %v900
        %950 = vmatprep.subr.bf16.mxu0 0
        %951 = vmatpush2.bf16.msra.mxu0 0
        %952 = vmatprep.subr.bf16.mxu0 0
        %953 = vmatpush2.bf16.msra.mxu0 0
        %954 = vmatprep.subr.bf16.mxu0 0
        %955 = vmatpush2.bf16.msra.mxu0 0
        %956 = vmatprep.subr.bf16.mxu0 0
        %957 = vmatpush2.bf16.msra.mxu0 0
        %958 = vmatprep.subr.bf16.mxu0 0
        %959 = vmatpush2.bf16.msra.mxu0 0
        %960 = vmatprep.subr.bf16.mxu0 0
        %961 = vmatpush2.bf16.msra.mxu0 0
        %962 = vmatprep.subr.bf16.mxu0 0
        %963 = vmatpush2.bf16.msra.mxu0 0
        %964 = vmatprep.subr.bf16.mxu0 0
        %965 = vmatpush2.bf16.msra.mxu0 0
        %966 = vmatprep.mubr.bf16.mxu0 0
        %967 = vmatmul.mubr.bf16.gmra.mxu0 %v907
        %v968 = vpop.f32.mrf.mxu0
        %v969 = vadd.f32 %v888, %v968
        %v970 = vpop.f32.mrf.mxu0
        %v971 = vpop.f32.mrf.mxu0
        %v972 = vadd.f32 %v888, %v971
        %v973 = vpop.f32.mrf.mxu0
        %974 = vmatprep.mubr.bf16.mxu0 0
        %975 = vmatmul.mubr.bf16.gmra.mxu0 %v910
        %v976 = vpop.f32.mrf.mxu0
        %v977 = vadd.f32 %v888, %v976
        %v978 = vpop.f32.mrf.mxu0
        %v979 = vpop.f32.mrf.mxu0
        %v980 = vadd.f32 %v888, %v979
        %v981 = vpop.f32.mrf.mxu0
        %982 = vmatprep.mubr.bf16.mxu0 0
        %983 = vmatmul.mubr.bf16.gmra.mxu0 %v913
        %v984 = vpop.f32.mrf.mxu0
        %v985 = vadd.f32 %v888, %v984
        %v986 = vpop.f32.mrf.mxu0
        %v987 = vpop.f32.mrf.mxu0
        %v988 = vadd.f32 %v888, %v987
        %v989 = vpop.f32.mrf.mxu0
        %990 = vmatprep.mubr.bf16.mxu0 0
        %991 = vmatmul.mubr.bf16.gmra.mxu0 %v916
        %v992 = vpop.f32.mrf.mxu0
        %v993 = vadd.f32 %v888, %v992
        %v994 = vpop.f32.mrf.mxu0
        %v995 = vpop.f32.mrf.mxu0
        %v996 = vadd.f32 %v888, %v995
        %v997 = vpop.f32.mrf.mxu0
        %998 = vmatprep.mubr.bf16.mxu0 0
        %999 = vmatmul.mubr.bf16.gmra.mxu0 %v919
        %v1000 = vpop.f32.mrf.mxu0
        %v1001 = vadd.f32 %v888, %v1000
        %v1002 = vpop.f32.mrf.mxu0
        %v1003 = vpop.f32.mrf.mxu0
        %v1004 = vadd.f32 %v888, %v1003
        %v1005 = vpop.f32.mrf.mxu0
        %1006 = vmatprep.mubr.bf16.mxu0 0
        %1007 = vmatmul.mubr.bf16.gmra.mxu0 %v922
        %v1008 = vpop.f32.mrf.mxu0
        %v1009 = vadd.f32 %v888, %v1008
        %v1010 = vpop.f32.mrf.mxu0
        %v1011 = vpop.f32.mrf.mxu0
        %v1012 = vadd.f32 %v888, %v1011
        %v1013 = vpop.f32.mrf.mxu0
        %1014 = vmatprep.mubr.bf16.mxu0 0
        %1015 = vmatmul.mubr.bf16.gmra.mxu0 %v925
        %v1016 = vpop.f32.mrf.mxu0
        %v1017 = vadd.f32 %v888, %v1016
        %v1018 = vpop.f32.mrf.mxu0
        %v1019 = vpop.f32.mrf.mxu0
        %v1020 = vadd.f32 %v888, %v1019
        %v1021 = vpop.f32.mrf.mxu0
        %1022 = vmatprep.mubr.bf16.mxu0 0
        %1023 = vmatmul.mubr.bf16.gmra.mxu0 %v928
        %v1024 = vpop.f32.mrf.mxu0
        %v1025 = vadd.f32 %v888, %v1024
        %v1026 = vpop.f32.mrf.mxu0
        %v1027 = vpop.f32.mrf.mxu0
        %v1028 = vadd.f32 %v888, %v1027
        %v1029 = vpop.f32.mrf.mxu0
        %1030 = vdwg.mxu0
        %v1031 = vmax.f32 %v969, 0.0
        %v1032 = vmax.f32 %v972, 0.0
        %v1033 = vmax.f32 %v977, 0.0
        %v1034 = vmax.f32 %v980, 0.0
        %v1035 = vmax.f32 %v985, 0.0
        %v1036 = vmax.f32 %v988, 0.0
        %v1037 = vmax.f32 %v993, 0.0
        %v1038 = vmax.f32 %v996, 0.0
        %v1039 = vmax.f32 %v1001, 0.0
        %v1040 = vmax.f32 %v1004, 0.0
        %v1041 = vmax.f32 %v1009, 0.0
        %v1042 = vmax.f32 %v1012, 0.0
        %v1043 = vmax.f32 %v1017, 0.0
        %v1044 = vmax.f32 %v1020, 0.0
        %v1045 = vmax.f32 %v1025, 0.0
        %v1046 = vmax.f32 %v1028, 0.0
        %1047 = vst [vmem:[%s177] sm:$0xff] %v1031
        %1048 = vst [vmem:[%s177 + $0x8] sm:$0xff] %v1032
        %1049 = vst [vmem:[%s177 + $0x10] sm:$0xff] %v1033
        %1050 = vst [vmem:[%s177 + $0x18] sm:$0xff] %v1034
        %1051 = vst [vmem:[%s177 + $0x20] sm:$0xff] %v1035
        %1052 = vst [vmem:[%s177 + $0x28] sm:$0xff] %v1036
        %1053 = vst [vmem:[%s177 + $0x30] sm:$0xff] %v1037
        %1054 = vst [vmem:[%s177 + $0x38] sm:$0xff] %v1038
        %1055 = vst [vmem:[%s177 + $0x40] sm:$0xff] %v1039
        %1056 = vst [vmem:[%s177 + $0x48] sm:$0xff] %v1040
        %1057 = vst [vmem:[%s177 + $0x50] sm:$0xff] %v1041
        %1058 = vst [vmem:[%s177 + $0x58] sm:$0xff] %v1042
        %1059 = vst [vmem:[%s177 + $0x60] sm:$0xff] %v1043
        %1060 = vst [vmem:[%s177 + $0x68] sm:$0xff] %v1044
        %1061 = vst [vmem:[%s177 + $0x70] sm:$0xff] %v1045
        %1062 = vst [vmem:[%s177 + $0x78] sm:$0xff] %v1046
        %s1063 = sand.u32 %s107, 1
        %s1064 = scalar_lea.sflag [#allocation3], %s1063
        %s1065 = sand.u32 %s107, 1
        %s1066 = smul.addr %s1065, 128
        %s1067 = scalar_lea.vmem [#allocation2], %s1066
        // Predicated region
        $region33: #{tpu_custom_call.1} parent=31 // pred_check
          %p1068 = pneg %p117
        $region34: #{tpu_custom_call.1} parent=31 // pred_check_branch
          %1070 = sbr.rel (%p1068) target = $region36
        $region35: #{tpu_custom_call.1} parent=31 // pred_region
          %s1071 = smul.u32 8, %s22
          %s1073 = ssub.s32 2048, 2048
          %1074 = vsyncadd %s1064, %s1073
          %s1075 = smul.addr %s1071, 2
          %s1076 = smul.addr %s21, 32
          %s1077 = sadd.s32 %s1075, %s1076
          %s1078 = smul.addr %s1077, 128
          %s1079 = scalar_lea.hbm %s3, %s1078
          %s1080 = sshll.u32 %s1067, 4
          %s1081 = int_to_ptr.vmem [resolvable:$true] %s1080
          %1086 = dma.vmem_to_hbm [thread:$0]  %s1081, 2048, %s1079, %s1064, 128, 128, 8
        $region36: #{tpu_custom_call.1} parent=31 // pred_fallthru
          _
      $region32: #{tpu_custom_call.1} parent=5 // pred_fallthru
        _
      %p1087 = scmp.le.s32.totalorder 2, %s12
      // Predicated region
      $region37: #{tpu_custom_call.1} parent=5 // pred_check
        %p1088 = pneg %p1087
      $region38: #{tpu_custom_call.1} parent=5 // pred_check_branch
        %1090 = sbr.rel (%p1088) target = $region40
      $region39: #{tpu_custom_call.1} parent=5 // pred_region
        %s1091 = ssub.s32 %s12, 2
        // Predicated region
        $region41: #{tpu_custom_call.1} parent=39 // pred_check
          %p1092 = pneg %p123
        $region42: #{tpu_custom_call.1} parent=39 // pred_check_branch
          %1094 = sbr.rel (%p1092) target = $region44
        $region43: #{tpu_custom_call.1} parent=39 // pred_region
          %s1095 = sand.u32 %s108, 1
          %s1096 = scalar_lea.sflag [#allocation3], %s1095
          %s1097 = sand.u32 %s108, 1
          %s1098 = smul.addr %s1097, 128
          %s1099 = scalar_lea.vmem [#allocation2], %s1098
          %1100 = dma.done %s1096, 2048
        $region44: #{tpu_custom_call.1} parent=39 // pred_fallthru
          _
      $region40: #{tpu_custom_call.1} parent=5 // pred_fallthru
        _
    $region6: #{tpu_custom_call.1} parent=1 // loop_footer
      %s16 = sadd.s32 1, %s12
    $region7: #{tpu_custom_call.1} parent=1 // loop_footer_branch
      %11 = sbr.rel target = $region3
    $region8: #{tpu_custom_call.1} parent=1 // loop_exit
      _
    %1101 = vsyncpa [#allocation3], 1
    %s1102 = scalar_lea.sflag [#allocation3], 1
    %1103 = vsyncpa %s1102, 1

</llo_original>
